<compile_context>
chip_gen: v5e
topology: v5e:2x2
jax: 0.10.0
libtpu: 0.0.40
codegen_flags: <defaults>
</compile_context>

<pallas_src>
import math

import jax
import jax.numpy as jnp
import numpy as np
from jax.experimental import pallas as pl
from jax.experimental.pallas import tpu as pltpu


def _globalize_kernel(x_ref, r_ref, s_same_ref, s_partner_ref, y_ref):
    """Rotate every interleaved 2-vector chunk of x by its per-row 2x2 matrix.

    x_ref:         [TM, Fp]  interleaved components (x0, x1, x0, x1, ...)
                             (Fp = g*F when g rows are folded per lane-row)
    r_ref:         [TM, Kp]  g flattened row-major 2x2 matrices per row,
                             zero-padded to Kp = round_up(4g, 8)
    s_same_ref:    [Kp, Fp]  constant 0/1 selection matrix (same-lane coeff)
    s_partner_ref: [Kp, Fp]  constant 0/1 selection matrix (partner coeff)
    y_ref:         [TM, Fp]  rotated, same interleaved layout
    """
    x = x_ref[...].astype(jnp.float32)                       # [TM, Fp]
    r = r_ref[...].astype(jnp.float32)                       # [TM, Kp]
    fp = x.shape[-1]

    # Per-lane coefficients via the otherwise-idle MXU:
    #   even lane: c_same = r00, c_partner = r01
    #   odd  lane: c_same = r11, c_partner = r10
    # (the selection matrices also pick the correct group's R when g > 1).
    c_same = jnp.dot(r, s_same_ref[...],
                     preferred_element_type=jnp.float32,
                     precision=jax.lax.Precision.HIGHEST)
    c_partner = jnp.dot(r, s_partner_ref[...],
                        preferred_element_type=jnp.float32,
                        precision=jax.lax.Precision.HIGHEST)

    # partner[lane] = x[lane+1] on even lanes (that chunk's x1),
    #                 x[lane-1] on odd  lanes (that chunk's x0).
    # Lane-parity mask is (1, Fp): broadcasts over sublanes (no [TM, Fp] iota).
    lane = jax.lax.broadcasted_iota(jnp.int32, (1, fp), 1)
    is_even = (lane & 1) == 0
    x_next = pltpu.roll(x, shift=fp - 1, axis=1)             # x[(i+1) % Fp]
    x_prev = pltpu.roll(x, shift=1, axis=1)                  # x[(i-1) % Fp]
    partner = jnp.where(is_even, x_next, x_prev)

    # TODO(synk): on v6e/v7x a bf16 bitcast pair-swap ((v<<16)|(v>>16) on u32)
    # could replace the rolls + select for bf16 inputs; f32 path kept for
    # portability (v5e has no bf16 VALU).
    y_ref[...] = (c_same * x + c_partner * partner).astype(y_ref.dtype)


def _round_up(v, m):
    return ((v + m - 1) // m) * m


def _choose_tm(M, F, itemsize):
    """Row tile: ~2 MiB of f32 working set per step; >=4 grid steps when M allows."""
    min_sub = {4: 8, 2: 16, 1: 32}.get(itemsize, 8)
    target_elems = 512 * 1024           # [tm, F] f32 temporary slab ~= 2 MiB
    tm = max(min_sub, target_elems // max(F, 1))
    tm = min(tm, 16384)                 # keep the sublane extent sane for tiny F
    if M > 4 * min_sub:
        # At least ~4 grid steps: steady-state pipelining + 2 TCs on v7x.
        tm = min(tm, _round_up(pl.cdiv(M, 4), min_sub))
    if tm >= M:
        return M                        # single full block: no (8,128) constraint
    return max(min_sub, (tm // min_sub) * min_sub)


def _selection_matrices(F, g, Kp):
    """Constant 0/1 matrices mapping flattened R coeffs to per-lane coeffs."""
    Fp = g * F
    s_same = np.zeros((Kp, Fp), np.float32)
    s_partner = np.zeros((Kp, Fp), np.float32)
    for lane in range(Fp):
        grp = lane // F
        if lane % 2 == 0:               # even lane holds x0 -> r00*x0 + r01*x1
            s_same[4 * grp + 0, lane] = 1.0
            s_partner[4 * grp + 1, lane] = 1.0
        else:                           # odd lane holds x1 -> r10*x0 + r11*x1
            s_same[4 * grp + 3, lane] = 1.0
            s_partner[4 * grp + 2, lane] = 1.0
    return s_same, s_partner


def globalizer(x, R, num_dims: int = 2):
    """Pallas equivalent of Globalizer(num_dims=2).forward(x, R)."""
    assert num_dims == 2, "kernel specialized for num_dims=2 (2x2 rotations)"
    *lead, F = x.shape
    assert F % num_dims == 0
    M = 1
    for d in lead:
        M *= d

    # Free, layout-preserving views (no extra HBM passes).
    x2 = x.reshape(M, F)
    Rf = R.reshape(M, num_dims * num_dims)        # row-major: r00, r01, r10, r11

    # Lane-dense repack: fold g consecutive rows per lane-row so the output
    # block's last dim is a multiple of 128 (full, unmasked vst's).
    if F % 128 != 0:
        g = math.lcm(F, 128) // F
        if M % g != 0:
            # TODO(synk): pad M up to a multiple of g to stay lane-dense; fall
            # back to masked partial stores for now.
            g = 1
    else:
        g = 1

    Fp = g * F
    Mg = M // g
    Kp = _round_up(4 * g, 8)                      # pad contraction dim for MXU
    xg = x2.reshape(Mg, Fp)
    rg = Rf.reshape(Mg, 4 * g)
    if Kp != 4 * g:
        rg = jnp.pad(rg, ((0, 0), (0, Kp - 4 * g)))
    s_same, s_partner = _selection_matrices(F, g, Kp)

    itemsize = jnp.dtype(x.dtype).itemsize
    tm = _choose_tm(Mg, Fp, itemsize)
    grid = (pl.cdiv(Mg, tm),)                     # masked tail block if needed

    cost = pl.CostEstimate(
        flops=11 * M * F,                         # 3 VPU flops/elem + selection matmul
        transcendentals=0,
        bytes_accessed=2 * M * F * itemsize + (M * 4 * Kp) // g + 2 * Kp * Fp * 4,
    )

    y = pl.pallas_call(
        _globalize_kernel,
        out_shape=jax.ShapeDtypeStruct((Mg, Fp), x.dtype),
        grid=grid,
        in_specs=[
            pl.BlockSpec((tm, Fp), lambda i: (i, 0)),
            pl.BlockSpec((tm, Kp), lambda i: (i, 0)),
            pl.BlockSpec((Kp, Fp), lambda i: (0, 0)),   # constant block (fetched once)
            pl.BlockSpec((Kp, Fp), lambda i: (0, 0)),   # constant block (fetched once)
        ],
        out_specs=pl.BlockSpec((tm, Fp), lambda i: (i, 0)),
        compiler_params=pltpu.CompilerParams(
            dimension_semantics=("parallel",),
            # ~20 MiB worst-case footprint (double-buffered x/y + f32 temps);
            # 40 MiB is safe on every generation (v7x physical VMEM: 64 MiB/TC).
            vmem_limit_bytes=40 * 1024 * 1024,
        ),
        cost_estimate=cost,
    )(xg, rg, jnp.asarray(s_same), jnp.asarray(s_partner))

    return y.reshape(*lead, F)


def _reference(x, R, num_dims: int = 2):
    """Pure-JAX reference: cat([R @ chunk for chunk in x.split(2, -1)], -1)."""
    *lead, F = x.shape
    K = F // num_dims
    xc = x.reshape(*lead, K, num_dims)
    yc = jnp.einsum("...ij,...kj->...ki", R, xc,
                    precision=jax.lax.Precision.HIGHEST)
    return yc.reshape(*lead, F)


if __name__ == "__main__":
    root = jax.random.PRNGKey(0)

    def make_inputs(key, B, N, F):
        kx, kr = jax.random.split(key)
        x = jax.random.normal(kx, (B, N, F), dtype=jnp.float32)
        # Deterministic per-position rotation matrices (proper 2D rotations).
        theta = jax.random.uniform(kr, (B, N), dtype=jnp.float32) * 2.0 * jnp.pi
        c, s = jnp.cos(theta), jnp.sin(theta)
        R = jnp.stack(
            [jnp.stack([c, -s], axis=-1), jnp.stack([s, c], axis=-1)], axis=-2
        )  # [B, N, 2, 2]
        return x, R

    cases = [
        (2, 16, 128),   # F % 128 == 0: directly lane-dense
        (2, 24, 64),    # F = 64: repacked g=2 -> lane-dense 128-wide rows
        (2, 8, 192),    # F = 192: repacked g=2 -> Fp=384 (multi-vreg roll path)
    ]
    keys = jax.random.split(root, len(cases))
    for key, (B, N, F) in zip(keys, cases):
        x, R = make_inputs(key, B, N, F)
        y = jax.block_until_ready(globalizer(x, R))
        y_ref = _reference(x, R)
        assert y.shape == x.shape
        err = float(jnp.max(jnp.abs(y - y_ref)))
        assert jnp.allclose(y, y_ref, atol=1e-5, rtol=1e-5), (B, N, F, err)

    print("KERNEL_OK")
</pallas_src>

<mosaic_0001>
module attributes {stable_mosaic.version = 11 : i64} {
  func.func @_globalize_kernel(%arg0: i32, %arg1: memref<32x128xf32, #tpu.memory_space<vmem>>, %arg2: memref<32x8xf32, #tpu.memory_space<vmem>>, %arg3: memref<8x128xf32, #tpu.memory_space<vmem>>, %arg4: memref<8x128xf32, #tpu.memory_space<vmem>>, %arg5: memref<32x128xf32, #tpu.memory_space<vmem>>) attributes {dimension_semantics = [#tpu.dimension_semantics<parallel>], iteration_bounds = array<i64: 1>, scalar_prefetch = 0 : i64, scratch_operands = 0 : i64, tpu.core_type = #tpu.core_type<tc>, window_params = [{transform_indices = @transform_0, window_bounds = array<i64: 32, 128>}, {transform_indices = @transform_1, window_bounds = array<i64: 32, 8>}, {pipeline_mode = #tpu.pipeline_mode<synchronous>, transform_indices = @transform_2, window_bounds = array<i64: 8, 128>}, {pipeline_mode = #tpu.pipeline_mode<synchronous>, transform_indices = @transform_3, window_bounds = array<i64: 8, 128>}, {transform_indices = @transform_4, window_bounds = array<i64: 32, 128>}]} {
    %c0 = arith.constant 0 : index
    %c0_0 = arith.constant 0 : index
    %0 = vector.load %arg1[%c0, %c0_0] : memref<32x128xf32, #tpu.memory_space<vmem>>, vector<32x128xf32>
    %c0_1 = arith.constant 0 : index
    %c0_2 = arith.constant 0 : index
    %1 = vector.load %arg2[%c0_1, %c0_2] : memref<32x8xf32, #tpu.memory_space<vmem>>, vector<32x8xf32>
    %c0_3 = arith.constant 0 : index
    %c0_4 = arith.constant 0 : index
    %2 = vector.load %arg3[%c0_3, %c0_4] : memref<8x128xf32, #tpu.memory_space<vmem>>, vector<8x128xf32>
    %cst = arith.constant dense<0.000000e+00> : vector<32x128xf32>
    %3 = tpu.matmul %1, %2, %cst {dimension_numbers = #tpu.dot_dimension_numbers<[1], [0], [0], [1], [0, 0, 1, 1], [], []>, precision = #tpu.contract_precision<fp32>} : vector<32x8xf32>, vector<8x128xf32>, vector<32x128xf32> -> vector<32x128xf32>
    %c0_5 = arith.constant 0 : index
    %c0_6 = arith.constant 0 : index
    %4 = vector.load %arg4[%c0_5, %c0_6] : memref<8x128xf32, #tpu.memory_space<vmem>>, vector<8x128xf32>
    %cst_7 = arith.constant dense<0.000000e+00> : vector<32x128xf32>
    %5 = tpu.matmul %1, %4, %cst_7 {dimension_numbers = #tpu.dot_dimension_numbers<[1], [0], [0], [1], [0, 0, 1, 1], [], []>, precision = #tpu.contract_precision<fp32>} : vector<32x8xf32>, vector<8x128xf32>, vector<32x128xf32> -> vector<32x128xf32>
    %6 = tpu.iota {dimensions = array<i32: 1>} : vector<1x128xi32>
    %c1_i32 = arith.constant 1 : i32
    %7 = vector.broadcast %c1_i32 : i32 to vector<1x128xi32>
    %8 = arith.andi %6, %7 : vector<1x128xi32>
    %c0_i32 = arith.constant 0 : i32
    %9 = vector.broadcast %c0_i32 : i32 to vector<1x128xi32>
    %10 = arith.cmpi eq, %8, %9 : vector<1x128xi32>
    %c127_i32 = arith.constant 127 : i32
    %11 = tpu.dynamic_rotate %0 by %c127_i32 dim 1 : vector<32x128xf32>, i32 -> vector<32x128xf32>
    %c1_i32_8 = arith.constant 1 : i32
    %12 = tpu.dynamic_rotate %0 by %c1_i32_8 dim 1 : vector<32x128xf32>, i32 -> vector<32x128xf32>
    %13 = vector.shape_cast %10 : vector<1x128xi1> to vector<1x128xi1>
    %14 = vector.broadcast %13 : vector<1x128xi1> to vector<32x128xi1>
    %15 = arith.select %14, %11, %12 : vector<32x128xi1>, vector<32x128xf32>
    %16 = arith.mulf %3, %0 : vector<32x128xf32>
    %17 = arith.mulf %5, %15 : vector<32x128xf32>
    %18 = arith.addf %16, %17 : vector<32x128xf32>
    %c0_9 = arith.constant 0 : index
    %c0_10 = arith.constant 0 : index
    %19 = vector.load %arg5[%c0_9, %c0_10] : memref<32x128xf32, #tpu.memory_space<vmem>>, vector<32x128xf32>
    tpu.vector_store %arg5[%c0_9, %c0_10], %18 {strides = array<i32>} : memref<32x128xf32, #tpu.memory_space<vmem>>, vector<32x128xf32>,
    return
  }
  func.func @transform_0(%arg0: i32) -> (i32, i32) {
    %c0_i32 = arith.constant 0 : i32
    %c0_i32_0 = arith.constant 0 : i32
    return %arg0, %c0_i32 : i32, i32
  }
  func.func @transform_1(%arg0: i32) -> (i32, i32) {
    %c0_i32 = arith.constant 0 : i32
    %c0_i32_0 = arith.constant 0 : i32
    return %arg0, %c0_i32 : i32, i32
  }
  func.func @transform_2(%arg0: i32) -> (i32, i32) {
    %c0_i32 = arith.constant 0 : i32
    %c0_i32_0 = arith.constant 0 : i32
    %c0_i32_1 = arith.constant 0 : i32
    return %c0_i32, %c0_i32_0 : i32, i32
  }
  func.func @transform_3(%arg0: i32) -> (i32, i32) {
    %c0_i32 = arith.constant 0 : i32
    %c0_i32_0 = arith.constant 0 : i32
    %c0_i32_1 = arith.constant 0 : i32
    return %c0_i32, %c0_i32_0 : i32, i32
  }
  func.func @transform_4(%arg0: i32) -> (i32, i32) {
    %c0_i32 = arith.constant 0 : i32
    %c0_i32_0 = arith.constant 0 : i32
    return %arg0, %c0_i32 : i32, i32
  }
}

</mosaic_0001>

<llo_original>
// kernel: tpu_custom_call.1
$region0: #{tpu_custom_call.1}
  #allocation0 [shape = 'u32[]', space=smem, size = 0x4, offset = 0x4, fixed_abs, tag = 'smem constant byte address 0x4 - core index']
  #allocation1 [shape = 'u32[72,128]{1,0:T(1,128)}', space=vmem, size = 0x9000, scoped, tag = 'internal scratch']
  %s0 = inlined_call_operand.vmem [shape: f32[32,128], index: 0, kind: input, shape index: {}]
  %s1 = inlined_call_operand.vmem [shape: f32[32,8], index: 1, kind: input, shape index: {}]
  %s2 = inlined_call_operand.vmem [shape: f32[8,128], index: 2, kind: input, shape index: {}]
  %s3 = inlined_call_operand.hbm [shape: f32[8,128], index: 3, kind: input, shape index: {}]
  %s4 = inlined_call_operand.hbm [shape: f32[32,128], index: 4, kind: output, shape index: {}]
  %s5 = sld [smem:[#allocation0]]
  $region30: #{tpu_custom_call.1} parent=0
    _
  %s7 = ssub.s32 1, %s5
  %s8 = scalar_select 0, %s7, %s5
  $region1: #{tpu_custom_call.1} parent=0
    #allocation2 [shape = 'u8[4096]{0}', space=vmem, size = 0x1000, scoped, tag = 'input window, operand 3, single buffered']
    #allocation3 [shape = 's32[1]{0}', space=sflag, size = 0x4, scoped, tag = 'scoped memory for tpu_custom_call.1']
    #allocation4 [shape = 's32[1]{0}', space=sflag, size = 0x4, scoped, tag = 'scoped memory for tpu_custom_call.1']
    #allocation5 [shape = 'u8[16384]{0}', space=vmem, size = 0x4000, scoped, tag = 'output window, operand 0, single buffered']
    %9 = vsyncpa [#allocation3], 0
    %10 = vsyncpa [#allocation4], 0
    // Predicated region
    $region2: #{tpu_custom_call.1} parent=1 // pred_check
      _
    $region3: #{tpu_custom_call.1} parent=1 // pred_check_branch
      %12 = sbr.rel (0) target = $region5
    $region4: #{tpu_custom_call.1} parent=1 // pred_region
      _
    $region5: #{tpu_custom_call.1} parent=1 // pred_fallthru
      _
    // Predicated region
    $region6: #{tpu_custom_call.1} parent=1 // pred_check
      _
    $region7: #{tpu_custom_call.1} parent=1 // pred_check_branch
      %14 = sbr.rel (0) target = $region9
    $region8: #{tpu_custom_call.1} parent=1 // pred_region
      _
    $region9: #{tpu_custom_call.1} parent=1 // pred_fallthru
      _
    // Predicated region
    $region10: #{tpu_custom_call.1} parent=1 // pred_check
      _
    $region11: #{tpu_custom_call.1} parent=1 // pred_check_branch
      %16 = sbr.rel (0) target = $region13
    $region12: #{tpu_custom_call.1} parent=1 // pred_region
      _
    $region13: #{tpu_custom_call.1} parent=1 // pred_fallthru
      _
    // Predicated region
    $region14: #{tpu_custom_call.1} parent=1 // pred_check
      _
    $region15: #{tpu_custom_call.1} parent=1 // pred_check_branch
      %18 = sbr.rel (0) target = $region17
    $region16: #{tpu_custom_call.1} parent=1 // pred_region
      %20 = vsyncadd [#allocation3], 0
      %s22 = sshll.u32 %s3, 4
      %s23 = int_to_ptr.hbm [resolvable:$true] %s22
      %s24 = sshll.u32 [#allocation2], 4
      %s25 = int_to_ptr.vmem [resolvable:$true] %s24
      %27 = dma.hbm_to_vmem [thread:$0]  %s23, 128, %s25, [#allocation3]
    $region17: #{tpu_custom_call.1} parent=1 // pred_fallthru
      _
    // Predicated region
    $region18: #{tpu_custom_call.1} parent=1 // pred_check
      _
    $region19: #{tpu_custom_call.1} parent=1 // pred_check_branch
      %29 = sbr.rel (0) target = $region21
    $region20: #{tpu_custom_call.1} parent=1 // pred_region
      %31 = dma.done [#allocation3], 128
    $region21: #{tpu_custom_call.1} parent=1 // pred_fallthru
      _
    %v32 = vld [vmem:[%s0] sm:$0xff]
    %v33 = vld [vmem:[%s0 + $0x8] sm:$0xff]
    %v34 = vld [vmem:[%s0 + $0x10] sm:$0xff]
    %v35 = vld [vmem:[%s0 + $0x18] sm:$0xff]
    %v36 = vld [vmem:[%s1] sm:$0xff]
    %v37 = vld [vmem:[%s1 + $0x8] sm:$0xff]
    %v38 = vld [vmem:[%s1 + $0x10] sm:$0xff]
    %v39 = vld [vmem:[%s1 + $0x18] sm:$0xff]
    %v40 = vld [vmem:[%s2] sm:$0xff]
    %vm41 = vcmask 64512
    %v43 = vsel %vm41, %v36, 0
    %v46 = vsel %vm41, %v37, 0
    %v49 = vsel %vm41, %v38, 0
    %v52 = vsel %vm41, %v39, 0
    %54 = vmatpush.msra.mxu0 0.0
    %55 = vmatpush.msra.mxu0 0.0
    %56 = vmatpush.msra.mxu0 0.0
    %57 = vmatpush.msra.mxu0 0.0
    %58 = vmatpush.msra.mxu0 0.0
    %59 = vmatpush.msra.mxu0 0.0
    %60 = vmatpush.msra.mxu0 0.0
    %61 = vmatpush.msra.mxu0 0.0
    %62 = vmatpush.msra.mxu0 0.0
    %63 = vmatpush.msra.mxu0 0.0
    %64 = vmatpush.msra.mxu0 0.0
    %65 = vmatpush.msra.mxu0 0.0
    %66 = vmatpush.msra.mxu0 0.0
    %67 = vmatpush.msra.mxu0 0.0
    %68 = vmatpush.msra.mxu0 0.0
    %v69 = vand.u32 %v40, 4294901760
    %70 = vmatpush.msra.mxu0 %v69
    %v71 = vand.u32 %v43, 4294901760
    %v72 = vsub.f32 %v43, %v71
    %v73 = vand.u32 %v72, 4294901760
    %v74 = vsub.f32 %v72, %v73
    %v75 = vand.u32 %v74, 4294901760
    %76 = vmatmul.f32.gmra.mxu0 %v75
    %v77 = vpop.f32.mrf.mxu0
    %v78 = vadd.f32 0.0, %v77
    %v79 = vand.u32 %v46, 4294901760
    %v80 = vsub.f32 %v46, %v79
    %v81 = vand.u32 %v80, 4294901760
    %v82 = vsub.f32 %v80, %v81
    %v83 = vand.u32 %v82, 4294901760
    %84 = vmatmul.f32.gmra.mxu0 %v83
    %v85 = vpop.f32.mrf.mxu0
    %v86 = vadd.f32 0.0, %v85
    %v87 = vand.u32 %v49, 4294901760
    %v88 = vsub.f32 %v49, %v87
    %v89 = vand.u32 %v88, 4294901760
    %v90 = vsub.f32 %v88, %v89
    %v91 = vand.u32 %v90, 4294901760
    %92 = vmatmul.f32.gmra.mxu0 %v91
    %v93 = vpop.f32.mrf.mxu0
    %v94 = vadd.f32 0.0, %v93
    %v95 = vand.u32 %v52, 4294901760
    %v96 = vsub.f32 %v52, %v95
    %v97 = vand.u32 %v96, 4294901760
    %v98 = vsub.f32 %v96, %v97
    %v99 = vand.u32 %v98, 4294901760
    %100 = vmatmul.f32.gmra.mxu0 %v99
    %v101 = vpop.f32.mrf.mxu0
    %v102 = vadd.f32 0.0, %v101
    %103 = vdwg.mxu0
    %104 = vmatpush.msra.mxu0 0.0
    %105 = vmatpush.msra.mxu0 0.0
    %106 = vmatpush.msra.mxu0 0.0
    %107 = vmatpush.msra.mxu0 0.0
    %108 = vmatpush.msra.mxu0 0.0
    %109 = vmatpush.msra.mxu0 0.0
    %110 = vmatpush.msra.mxu0 0.0
    %111 = vmatpush.msra.mxu0 0.0
    %112 = vmatpush.msra.mxu0 0.0
    %113 = vmatpush.msra.mxu0 0.0
    %114 = vmatpush.msra.mxu0 0.0
    %115 = vmatpush.msra.mxu0 0.0
    %116 = vmatpush.msra.mxu0 0.0
    %117 = vmatpush.msra.mxu0 0.0
    %118 = vmatpush.msra.mxu0 0.0
    %v119 = vand.u32 %v40, 4294901760
    %v120 = vsub.f32 %v40, %v119
    %v121 = vand.u32 %v120, 4294901760
    %v122 = vsub.f32 %v120, %v121
    %v123 = vand.u32 %v122, 4294901760
    %124 = vmatpush.msra.mxu0 %v123
    %v125 = vand.u32 %v43, 4294901760
    %126 = vmatmul.f32.gmra.mxu0 %v125
    %v127 = vpop.f32.mrf.mxu0
    %v128 = vadd.f32 %v78, %v127
    %v129 = vand.u32 %v46, 4294901760
    %130 = vmatmul.f32.gmra.mxu0 %v129
    %v131 = vpop.f32.mrf.mxu0
    %v132 = vadd.f32 %v86, %v131
    %v133 = vand.u32 %v49, 4294901760
    %134 = vmatmul.f32.gmra.mxu0 %v133
    %v135 = vpop.f32.mrf.mxu0
    %v136 = vadd.f32 %v94, %v135
    %v137 = vand.u32 %v52, 4294901760
    %138 = vmatmul.f32.gmra.mxu0 %v137
    %v139 = vpop.f32.mrf.mxu0
    %v140 = vadd.f32 %v102, %v139
    %141 = vdwg.mxu0
    %142 = vmatpush.msra.mxu0 0.0
    %143 = vmatpush.msra.mxu0 0.0
    %144 = vmatpush.msra.mxu0 0.0
    %145 = vmatpush.msra.mxu0 0.0
    %146 = vmatpush.msra.mxu0 0.0
    %147 = vmatpush.msra.mxu0 0.0
    %148 = vmatpush.msra.mxu0 0.0
    %149 = vmatpush.msra.mxu0 0.0
    %150 = vmatpush.msra.mxu0 0.0
    %151 = vmatpush.msra.mxu0 0.0
    %152 = vmatpush.msra.mxu0 0.0
    %153 = vmatpush.msra.mxu0 0.0
    %154 = vmatpush.msra.mxu0 0.0
    %155 = vmatpush.msra.mxu0 0.0
    %156 = vmatpush.msra.mxu0 0.0
    %v157 = vand.u32 %v40, 4294901760
    %v158 = vsub.f32 %v40, %v157
    %159 = vmatpush.msra.mxu0 %v158
    %v160 = vand.u32 %v43, 4294901760
    %v161 = vsub.f32 %v43, %v160
    %162 = vmatmul.f32.gmra.mxu0 %v161
    %v163 = vpop.f32.mrf.mxu0
    %v164 = vadd.f32 %v128, %v163
    %v165 = vand.u32 %v46, 4294901760
    %v166 = vsub.f32 %v46, %v165
    %167 = vmatmul.f32.gmra.mxu0 %v166
    %v168 = vpop.f32.mrf.mxu0
    %v169 = vadd.f32 %v132, %v168
    %v170 = vand.u32 %v49, 4294901760
    %v171 = vsub.f32 %v49, %v170
    %172 = vmatmul.f32.gmra.mxu0 %v171
    %v173 = vpop.f32.mrf.mxu0
    %v174 = vadd.f32 %v136, %v173
    %v175 = vand.u32 %v52, 4294901760
    %v176 = vsub.f32 %v52, %v175
    %177 = vmatmul.f32.gmra.mxu0 %v176
    %v178 = vpop.f32.mrf.mxu0
    %v179 = vadd.f32 %v140, %v178
    %180 = vdwg.mxu0
    %181 = vmatpush.msra.mxu0 0.0
    %182 = vmatpush.msra.mxu0 0.0
    %183 = vmatpush.msra.mxu0 0.0
    %184 = vmatpush.msra.mxu0 0.0
    %185 = vmatpush.msra.mxu0 0.0
    %186 = vmatpush.msra.mxu0 0.0
    %187 = vmatpush.msra.mxu0 0.0
    %188 = vmatpush.msra.mxu0 0.0
    %189 = vmatpush.msra.mxu0 0.0
    %190 = vmatpush.msra.mxu0 0.0
    %191 = vmatpush.msra.mxu0 0.0
    %192 = vmatpush.msra.mxu0 0.0
    %193 = vmatpush.msra.mxu0 0.0
    %194 = vmatpush.msra.mxu0 0.0
    %195 = vmatpush.msra.mxu0 0.0
    %v196 = vand.u32 %v40, 4294901760
    %197 = vmatpush.msra.mxu0 %v196
    %v198 = vand.u32 %v43, 4294901760
    %v199 = vsub.f32 %v43, %v198
    %v200 = vand.u32 %v199, 4294901760
    %201 = vmatmul.f32.gmra.mxu0 %v200
    %v202 = vpop.f32.mrf.mxu0
    %v203 = vadd.f32 %v164, %v202
    %v204 = vand.u32 %v46, 4294901760
    %v205 = vsub.f32 %v46, %v204
    %v206 = vand.u32 %v205, 4294901760
    %207 = vmatmul.f32.gmra.mxu0 %v206
    %v208 = vpop.f32.mrf.mxu0
    %v209 = vadd.f32 %v169, %v208
    %v210 = vand.u32 %v49, 4294901760
    %v211 = vsub.f32 %v49, %v210
    %v212 = vand.u32 %v211, 4294901760
    %213 = vmatmul.f32.gmra.mxu0 %v212
    %v214 = vpop.f32.mrf.mxu0
    %v215 = vadd.f32 %v174, %v214
    %v216 = vand.u32 %v52, 4294901760
    %v217 = vsub.f32 %v52, %v216
    %v218 = vand.u32 %v217, 4294901760
    %219 = vmatmul.f32.gmra.mxu0 %v218
    %v220 = vpop.f32.mrf.mxu0
    %v221 = vadd.f32 %v179, %v220
    %222 = vdwg.mxu0
    %223 = vmatpush.msra.mxu0 0.0
    %224 = vmatpush.msra.mxu0 0.0
    %225 = vmatpush.msra.mxu0 0.0
    %226 = vmatpush.msra.mxu0 0.0
    %227 = vmatpush.msra.mxu0 0.0
    %228 = vmatpush.msra.mxu0 0.0
    %229 = vmatpush.msra.mxu0 0.0
    %230 = vmatpush.msra.mxu0 0.0
    %231 = vmatpush.msra.mxu0 0.0
    %232 = vmatpush.msra.mxu0 0.0
    %233 = vmatpush.msra.mxu0 0.0
    %234 = vmatpush.msra.mxu0 0.0
    %235 = vmatpush.msra.mxu0 0.0
    %236 = vmatpush.msra.mxu0 0.0
    %237 = vmatpush.msra.mxu0 0.0
    %v238 = vand.u32 %v40, 4294901760
    %v239 = vsub.f32 %v40, %v238
    %v240 = vand.u32 %v239, 4294901760
    %241 = vmatpush.msra.mxu0 %v240
    %v242 = vand.u32 %v43, 4294901760
    %243 = vmatmul.f32.gmra.mxu0 %v242
    %v244 = vpop.f32.mrf.mxu0
    %v245 = vadd.f32 %v203, %v244
    %v246 = vand.u32 %v46, 4294901760
    %247 = vmatmul.f32.gmra.mxu0 %v246
    %v248 = vpop.f32.mrf.mxu0
    %v249 = vadd.f32 %v209, %v248
    %v250 = vand.u32 %v49, 4294901760
    %251 = vmatmul.f32.gmra.mxu0 %v250
    %v252 = vpop.f32.mrf.mxu0
    %v253 = vadd.f32 %v215, %v252
    %v254 = vand.u32 %v52, 4294901760
    %255 = vmatmul.f32.gmra.mxu0 %v254
    %v256 = vpop.f32.mrf.mxu0
    %v257 = vadd.f32 %v221, %v256
    %258 = vdwg.mxu0
    %259 = vmatpush.msra.mxu0 0.0
    %260 = vmatpush.msra.mxu0 0.0
    %261 = vmatpush.msra.mxu0 0.0
    %262 = vmatpush.msra.mxu0 0.0
    %263 = vmatpush.msra.mxu0 0.0
    %264 = vmatpush.msra.mxu0 0.0
    %265 = vmatpush.msra.mxu0 0.0
    %266 = vmatpush.msra.mxu0 0.0
    %267 = vmatpush.msra.mxu0 0.0
    %268 = vmatpush.msra.mxu0 0.0
    %269 = vmatpush.msra.mxu0 0.0
    %270 = vmatpush.msra.mxu0 0.0
    %271 = vmatpush.msra.mxu0 0.0
    %272 = vmatpush.msra.mxu0 0.0
    %273 = vmatpush.msra.mxu0 0.0
    %v274 = vand.u32 %v40, 4294901760
    %275 = vmatpush.msra.mxu0 %v274
    %v276 = vand.u32 %v43, 4294901760
    %277 = vmatmul.f32.gmra.mxu0 %v276
    %v278 = vpop.f32.mrf.mxu0
    %v279 = vadd.f32 %v245, %v278
    %v280 = vand.u32 %v46, 4294901760
    %281 = vmatmul.f32.gmra.mxu0 %v280
    %v282 = vpop.f32.mrf.mxu0
    %v283 = vadd.f32 %v249, %v282
    %v284 = vand.u32 %v49, 4294901760
    %285 = vmatmul.f32.gmra.mxu0 %v284
    %v286 = vpop.f32.mrf.mxu0
    %v287 = vadd.f32 %v253, %v286
    %v288 = vand.u32 %v52, 4294901760
    %289 = vmatmul.f32.gmra.mxu0 %v288
    %v290 = vpop.f32.mrf.mxu0
    %v291 = vadd.f32 %v257, %v290
    %292 = vdwg.mxu0
    %v293 = vld [vmem:[#allocation2] sm:$0xff]
    %294 = vmatpush.msra.mxu0 0.0
    %295 = vmatpush.msra.mxu0 0.0
    %296 = vmatpush.msra.mxu0 0.0
    %297 = vmatpush.msra.mxu0 0.0
    %298 = vmatpush.msra.mxu0 0.0
    %299 = vmatpush.msra.mxu0 0.0
    %300 = vmatpush.msra.mxu0 0.0
    %301 = vmatpush.msra.mxu0 0.0
    %302 = vmatpush.msra.mxu0 0.0
    %303 = vmatpush.msra.mxu0 0.0
    %304 = vmatpush.msra.mxu0 0.0
    %305 = vmatpush.msra.mxu0 0.0
    %306 = vmatpush.msra.mxu0 0.0
    %307 = vmatpush.msra.mxu0 0.0
    %308 = vmatpush.msra.mxu0 0.0
    %v309 = vand.u32 %v293, 4294901760
    %310 = vmatpush.msra.mxu0 %v309
    %v311 = vand.u32 %v43, 4294901760
    %v312 = vsub.f32 %v43, %v311
    %v313 = vand.u32 %v312, 4294901760
    %v314 = vsub.f32 %v312, %v313
    %v315 = vand.u32 %v314, 4294901760
    %316 = vmatmul.f32.gmra.mxu0 %v315
    %v317 = vpop.f32.mrf.mxu0
    %v318 = vadd.f32 0.0, %v317
    %v319 = vand.u32 %v46, 4294901760
    %v320 = vsub.f32 %v46, %v319
    %v321 = vand.u32 %v320, 4294901760
    %v322 = vsub.f32 %v320, %v321
    %v323 = vand.u32 %v322, 4294901760
    %324 = vmatmul.f32.gmra.mxu0 %v323
    %v325 = vpop.f32.mrf.mxu0
    %v326 = vadd.f32 0.0, %v325
    %v327 = vand.u32 %v49, 4294901760
    %v328 = vsub.f32 %v49, %v327
    %v329 = vand.u32 %v328, 4294901760
    %v330 = vsub.f32 %v328, %v329
    %v331 = vand.u32 %v330, 4294901760
    %332 = vmatmul.f32.gmra.mxu0 %v331
    %v333 = vpop.f32.mrf.mxu0
    %v334 = vadd.f32 0.0, %v333
    %v335 = vand.u32 %v52, 4294901760
    %v336 = vsub.f32 %v52, %v335
    %v337 = vand.u32 %v336, 4294901760
    %v338 = vsub.f32 %v336, %v337
    %v339 = vand.u32 %v338, 4294901760
    %340 = vmatmul.f32.gmra.mxu0 %v339
    %v341 = vpop.f32.mrf.mxu0
    %v342 = vadd.f32 0.0, %v341
    %343 = vdwg.mxu0
    %344 = vmatpush.msra.mxu0 0.0
    %345 = vmatpush.msra.mxu0 0.0
    %346 = vmatpush.msra.mxu0 0.0
    %347 = vmatpush.msra.mxu0 0.0
    %348 = vmatpush.msra.mxu0 0.0
    %349 = vmatpush.msra.mxu0 0.0
    %350 = vmatpush.msra.mxu0 0.0
    %351 = vmatpush.msra.mxu0 0.0
    %352 = vmatpush.msra.mxu0 0.0
    %353 = vmatpush.msra.mxu0 0.0
    %354 = vmatpush.msra.mxu0 0.0
    %355 = vmatpush.msra.mxu0 0.0
    %356 = vmatpush.msra.mxu0 0.0
    %357 = vmatpush.msra.mxu0 0.0
    %358 = vmatpush.msra.mxu0 0.0
    %v359 = vand.u32 %v293, 4294901760
    %v360 = vsub.f32 %v293, %v359
    %v361 = vand.u32 %v360, 4294901760
    %v362 = vsub.f32 %v360, %v361
    %v363 = vand.u32 %v362, 4294901760
    %364 = vmatpush.msra.mxu0 %v363
    %v365 = vand.u32 %v43, 4294901760
    %366 = vmatmul.f32.gmra.mxu0 %v365
    %v367 = vpop.f32.mrf.mxu0
    %v368 = vadd.f32 %v318, %v367
    %v369 = vand.u32 %v46, 4294901760
    %370 = vmatmul.f32.gmra.mxu0 %v369
    %v371 = vpop.f32.mrf.mxu0
    %v372 = vadd.f32 %v326, %v371
    %v373 = vand.u32 %v49, 4294901760
    %374 = vmatmul.f32.gmra.mxu0 %v373
    %v375 = vpop.f32.mrf.mxu0
    %v376 = vadd.f32 %v334, %v375
    %v377 = vand.u32 %v52, 4294901760
    %378 = vmatmul.f32.gmra.mxu0 %v377
    %v379 = vpop.f32.mrf.mxu0
    %v380 = vadd.f32 %v342, %v379
    %381 = vdwg.mxu0
    %382 = vmatpush.msra.mxu0 0.0
    %383 = vmatpush.msra.mxu0 0.0
    %384 = vmatpush.msra.mxu0 0.0
    %385 = vmatpush.msra.mxu0 0.0
    %386 = vmatpush.msra.mxu0 0.0
    %387 = vmatpush.msra.mxu0 0.0
    %388 = vmatpush.msra.mxu0 0.0
    %389 = vmatpush.msra.mxu0 0.0
    %390 = vmatpush.msra.mxu0 0.0
    %391 = vmatpush.msra.mxu0 0.0
    %392 = vmatpush.msra.mxu0 0.0
    %393 = vmatpush.msra.mxu0 0.0
    %394 = vmatpush.msra.mxu0 0.0
    %395 = vmatpush.msra.mxu0 0.0
    %396 = vmatpush.msra.mxu0 0.0
    %v397 = vand.u32 %v293, 4294901760
    %v398 = vsub.f32 %v293, %v397
    %399 = vmatpush.msra.mxu0 %v398
    %v400 = vand.u32 %v43, 4294901760
    %v401 = vsub.f32 %v43, %v400
    %402 = vmatmul.f32.gmra.mxu0 %v401
    %v403 = vpop.f32.mrf.mxu0
    %v404 = vadd.f32 %v368, %v403
    %v405 = vand.u32 %v46, 4294901760
    %v406 = vsub.f32 %v46, %v405
    %407 = vmatmul.f32.gmra.mxu0 %v406
    %v408 = vpop.f32.mrf.mxu0
    %v409 = vadd.f32 %v372, %v408
    %v410 = vand.u32 %v49, 4294901760
    %v411 = vsub.f32 %v49, %v410
    %412 = vmatmul.f32.gmra.mxu0 %v411
    %v413 = vpop.f32.mrf.mxu0
    %v414 = vadd.f32 %v376, %v413
    %v415 = vand.u32 %v52, 4294901760
    %v416 = vsub.f32 %v52, %v415
    %417 = vmatmul.f32.gmra.mxu0 %v416
    %v418 = vpop.f32.mrf.mxu0
    %v419 = vadd.f32 %v380, %v418
    %420 = vdwg.mxu0
    %421 = vmatpush.msra.mxu0 0.0
    %422 = vmatpush.msra.mxu0 0.0
    %423 = vmatpush.msra.mxu0 0.0
    %424 = vmatpush.msra.mxu0 0.0
    %425 = vmatpush.msra.mxu0 0.0
    %426 = vmatpush.msra.mxu0 0.0
    %427 = vmatpush.msra.mxu0 0.0
    %428 = vmatpush.msra.mxu0 0.0
    %429 = vmatpush.msra.mxu0 0.0
    %430 = vmatpush.msra.mxu0 0.0
    %431 = vmatpush.msra.mxu0 0.0
    %432 = vmatpush.msra.mxu0 0.0
    %433 = vmatpush.msra.mxu0 0.0
    %434 = vmatpush.msra.mxu0 0.0
    %435 = vmatpush.msra.mxu0 0.0
    %v436 = vand.u32 %v293, 4294901760
    %437 = vmatpush.msra.mxu0 %v436
    %v438 = vand.u32 %v43, 4294901760
    %v439 = vsub.f32 %v43, %v438
    %v440 = vand.u32 %v439, 4294901760
    %441 = vmatmul.f32.gmra.mxu0 %v440
    %v442 = vpop.f32.mrf.mxu0
    %v443 = vadd.f32 %v404, %v442
    %v444 = vand.u32 %v46, 4294901760
    %v445 = vsub.f32 %v46, %v444
    %v446 = vand.u32 %v445, 4294901760
    %447 = vmatmul.f32.gmra.mxu0 %v446
    %v448 = vpop.f32.mrf.mxu0
    %v449 = vadd.f32 %v409, %v448
    %v450 = vand.u32 %v49, 4294901760
    %v451 = vsub.f32 %v49, %v450
    %v452 = vand.u32 %v451, 4294901760
    %453 = vmatmul.f32.gmra.mxu0 %v452
    %v454 = vpop.f32.mrf.mxu0
    %v455 = vadd.f32 %v414, %v454
    %v456 = vand.u32 %v52, 4294901760
    %v457 = vsub.f32 %v52, %v456
    %v458 = vand.u32 %v457, 4294901760
    %459 = vmatmul.f32.gmra.mxu0 %v458
    %v460 = vpop.f32.mrf.mxu0
    %v461 = vadd.f32 %v419, %v460
    %462 = vdwg.mxu0
    %463 = vmatpush.msra.mxu0 0.0
    %464 = vmatpush.msra.mxu0 0.0
    %465 = vmatpush.msra.mxu0 0.0
    %466 = vmatpush.msra.mxu0 0.0
    %467 = vmatpush.msra.mxu0 0.0
    %468 = vmatpush.msra.mxu0 0.0
    %469 = vmatpush.msra.mxu0 0.0
    %470 = vmatpush.msra.mxu0 0.0
    %471 = vmatpush.msra.mxu0 0.0
    %472 = vmatpush.msra.mxu0 0.0
    %473 = vmatpush.msra.mxu0 0.0
    %474 = vmatpush.msra.mxu0 0.0
    %475 = vmatpush.msra.mxu0 0.0
    %476 = vmatpush.msra.mxu0 0.0
    %477 = vmatpush.msra.mxu0 0.0
    %v478 = vand.u32 %v293, 4294901760
    %v479 = vsub.f32 %v293, %v478
    %v480 = vand.u32 %v479, 4294901760
    %481 = vmatpush.msra.mxu0 %v480
    %v482 = vand.u32 %v43, 4294901760
    %483 = vmatmul.f32.gmra.mxu0 %v482
    %v484 = vpop.f32.mrf.mxu0
    %v485 = vadd.f32 %v443, %v484
    %v486 = vand.u32 %v46, 4294901760
    %487 = vmatmul.f32.gmra.mxu0 %v486
    %v488 = vpop.f32.mrf.mxu0
    %v489 = vadd.f32 %v449, %v488
    %v490 = vand.u32 %v49, 4294901760
    %491 = vmatmul.f32.gmra.mxu0 %v490
    %v492 = vpop.f32.mrf.mxu0
    %v493 = vadd.f32 %v455, %v492
    %v494 = vand.u32 %v52, 4294901760
    %495 = vmatmul.f32.gmra.mxu0 %v494
    %v496 = vpop.f32.mrf.mxu0
    %v497 = vadd.f32 %v461, %v496
    %498 = vdwg.mxu0
    %499 = vmatpush.msra.mxu0 0.0
    %500 = vmatpush.msra.mxu0 0.0
    %501 = vmatpush.msra.mxu0 0.0
    %502 = vmatpush.msra.mxu0 0.0
    %503 = vmatpush.msra.mxu0 0.0
    %504 = vmatpush.msra.mxu0 0.0
    %505 = vmatpush.msra.mxu0 0.0
    %506 = vmatpush.msra.mxu0 0.0
    %507 = vmatpush.msra.mxu0 0.0
    %508 = vmatpush.msra.mxu0 0.0
    %509 = vmatpush.msra.mxu0 0.0
    %510 = vmatpush.msra.mxu0 0.0
    %511 = vmatpush.msra.mxu0 0.0
    %512 = vmatpush.msra.mxu0 0.0
    %513 = vmatpush.msra.mxu0 0.0
    %v514 = vand.u32 %v293, 4294901760
    %515 = vmatpush.msra.mxu0 %v514
    %v516 = vand.u32 %v43, 4294901760
    %517 = vmatmul.f32.gmra.mxu0 %v516
    %v518 = vpop.f32.mrf.mxu0
    %v519 = vadd.f32 %v485, %v518
    %v520 = vand.u32 %v46, 4294901760
    %521 = vmatmul.f32.gmra.mxu0 %v520
    %v522 = vpop.f32.mrf.mxu0
    %v523 = vadd.f32 %v489, %v522
    %v524 = vand.u32 %v49, 4294901760
    %525 = vmatmul.f32.gmra.mxu0 %v524
    %v526 = vpop.f32.mrf.mxu0
    %v527 = vadd.f32 %v493, %v526
    %v528 = vand.u32 %v52, 4294901760
    %529 = vmatmul.f32.gmra.mxu0 %v528
    %v530 = vpop.f32.mrf.mxu0
    %v531 = vadd.f32 %v497, %v530
    %532 = vdwg.mxu0
    %v533 = vlaneseq
    %v534 = vand.u32 %v533, 127
    %v535 = vand.u32 %v534, 1
    %vm536 = vcmp.eq.s32.totalorder %v535, 0
    %537 = vrot.lane.b32.xlu0 %v32, 127
    %v538 = vpop.permute.xlu0 %537
    %539 = vrot.lane.b32.xlu0 %v33, 127
    %v540 = vpop.permute.xlu0 %539
    %541 = vrot.lane.b32.xlu0 %v34, 127
    %v542 = vpop.permute.xlu0 %541
    %543 = vrot.lane.b32.xlu0 %v35, 127
    %v544 = vpop.permute.xlu0 %543
    %545 = vrot.lane.b32.xlu0 %v32, 1
    %v546 = vpop.permute.xlu0 %545
    %547 = vrot.lane.b32.xlu0 %v33, 1
    %v548 = vpop.permute.xlu0 %547
    %549 = vrot.lane.b32.xlu0 %v34, 1
    %v550 = vpop.permute.xlu0 %549
    %551 = vrot.lane.b32.xlu0 %v35, 1
    %v552 = vpop.permute.xlu0 %551
    %v553 = vsel %vm536, 1, 0
    %vm554 = vcmp.eq.s32.totalorder %v553, 1
    %v555 = vsel %vm554, %v538, %v546
    %v556 = vsel %vm554, %v540, %v548
    %v557 = vsel %vm554, %v542, %v550
    %v558 = vsel %vm554, %v544, %v552
    %v559 = vmul.f32 %v279, %v32
    %v560 = vmul.f32 %v283, %v33
    %v561 = vmul.f32 %v287, %v34
    %v562 = vmul.f32 %v291, %v35
    %v563 = vmul.f32 %v519, %v555
    %v564 = vmul.f32 %v523, %v556
    %v565 = vmul.f32 %v527, %v557
    %v566 = vmul.f32 %v531, %v558
    %v567 = vadd.f32 %v559, %v563
    %v568 = vadd.f32 %v560, %v564
    %v569 = vadd.f32 %v561, %v565
    %v570 = vadd.f32 %v562, %v566
    %571 = vst [vmem:[#allocation5] sm:$0xff] %v567
    %572 = vst [vmem:[#allocation5 + $0x8] sm:$0xff] %v568
    %573 = vst [vmem:[#allocation5 + $0x10] sm:$0xff] %v569
    %574 = vst [vmem:[#allocation5 + $0x18] sm:$0xff] %v570
    // Predicated region
    $region22: #{tpu_custom_call.1} parent=1 // pred_check
      _
    $region23: #{tpu_custom_call.1} parent=1 // pred_check_branch
      %576 = sbr.rel (0) target = $region25
    $region24: #{tpu_custom_call.1} parent=1 // pred_region
      %578 = vsyncadd [#allocation4], 0
      %s579 = sshll.u32 [#allocation5], 4
      %s580 = int_to_ptr.vmem [resolvable:$true] %s579
      %s581 = sshll.u32 %s4, 4
      %s582 = int_to_ptr.hbm [resolvable:$true] %s581
      %587 = dma.vmem_to_hbm [thread:$0]  %s580, 512, %s582, [#allocation4], 128, 128, 8
    $region25: #{tpu_custom_call.1} parent=1 // pred_fallthru
      _
    // Predicated region
    $region26: #{tpu_custom_call.1} parent=1 // pred_check
      _
    $region27: #{tpu_custom_call.1} parent=1 // pred_check_branch
      %589 = sbr.rel (0) target = $region29
    $region28: #{tpu_custom_call.1} parent=1 // pred_region
      %591 = dma.done [#allocation4], 512
    $region29: #{tpu_custom_call.1} parent=1 // pred_fallthru
      _
    %592 = vsyncpa [#allocation3], 1
    %593 = vsyncpa [#allocation4], 1

</llo_original>
